<compile_context>
chip_gen: v7x
topology: tpu7x:2x2x1
jax: 0.10.0
libtpu: 0.0.40
codegen_flags: <defaults>
</compile_context>

<pallas_src>
import functools

import jax
import jax.numpy as jnp
from jax.experimental import pallas as pl
from jax.experimental.pallas import tpu as pltpu


_BLOCK_K_CAP = 1024                       # composed output rows per block
_STREAM_VMEM_BUDGET = 24 * 1024 * 1024    # budget for double-buffered streamed tiles
_VMEM_LIMIT_BYTES = 48 * 1024 * 1024      # explicit scoped-VMEM limit (ok on v5e/v6e/v7x)


def _round_up(x, m):
    return ((x + m - 1) // m) * m


@functools.lru_cache(maxsize=None)
def _buffered_one():
    """pl.Buffered(1) single-buffers grid-invariant operands (halves their VMEM
    footprint).  Probe once; fall back to default double-buffering if the
    installed jax/libtpu rejects buffer_count == 1 or the pipeline_mode kwarg."""
    def _probe(x_ref, o_ref):
        o_ref[...] = x_ref[...]
    try:
        fn = pl.pallas_call(
            _probe,
            out_shape=jax.ShapeDtypeStruct((8, 128), jnp.float32),
            grid_spec=pltpu.PrefetchScalarGridSpec(
                num_scalar_prefetch=0,
                grid=(1,),
                in_specs=[pl.BlockSpec((8, 128), lambda i: (0, 0),
                                       pipeline_mode=pl.Buffered(1))],
                out_specs=pl.BlockSpec((8, 128), lambda i: (0, 0)),
            ),
        )
        jax.block_until_ready(fn(jnp.zeros((8, 128), jnp.float32)))
        return pl.Buffered(1)
    except Exception:  # version-dependent feature; never fail the forward pass
        return None


def _block_spec(block_shape, index_map, pipeline_mode=None):
    if pipeline_mode is None:
        return pl.BlockSpec(block_shape, index_map)
    return pl.BlockSpec(block_shape, index_map, pipeline_mode=pipeline_mode)


def _select_tile_m(M, per_col_bytes, budget_bytes):
    """Lane tile for the pixel axis: multiple of 128, fits the VMEM budget,
    prefers >=2 grid steps (keeps both v7x TensorCores busy), then minimal
    padded-pixel waste, then the largest tile (fewer per-step overheads)."""
    m128 = _round_up(M, 128)
    best_t, best_key = None, None
    for t in (2048, 1024, 512, 256, 128):
        if t > m128 or t * per_col_bytes > budget_bytes:
            continue
        g = -(-m128 // t)
        key = (g < 2, g * t - M, -t)
        if best_key is None or key < best_key:
            best_t, best_key = t, key
    return best_t if best_t is not None else 128


def _select_block_k(K, cap):
    """Largest divisor of K that is a multiple of 8 and <= cap (or K itself)."""
    if K <= cap:
        return K
    best = None
    for d in range(8, cap + 1, 8):
        if K % d == 0:
            best = d
    return best if best is not None else K


# ----------------------------------------------------------------------------
# Kernel 1: single composed matmul (used when Cin <= k^2 * Cout)
#   (block_k, Cin+1)bf16 @ (Cin+1, tm)bf16 -> f32 accumulate -> bf16 store.
#   The bias rides in the last weight column (x carries a ones-row).
# ----------------------------------------------------------------------------
def _fused_matmul_kernel(w_ref, x_ref, o_ref):
    o_ref[...] = jnp.dot(
        w_ref[...], x_ref[...], preferred_element_type=jnp.float32
    ).astype(o_ref.dtype)


def _fused_pixel_matmul(w_aug, x_aug, *, block_k, tile_m):
    """w_aug: (K, Cin+1) bf16, x_aug: (Cin+1, M) bf16 -> (K, M) bf16."""
    K, Ca = w_aug.shape
    M = x_aug.shape[1]
    assert K % block_k == 0 and M % tile_m == 0 and tile_m % 128 == 0
    grid_k, grid_m = K // block_k, M // tile_m
    buf1 = _buffered_one()
    return pl.pallas_call(
        _fused_matmul_kernel,
        out_shape=jax.ShapeDtypeStruct((K, M), jnp.bfloat16),
        grid_spec=pltpu.PrefetchScalarGridSpec(
            num_scalar_prefetch=0,
            grid=(grid_k, grid_m),
            in_specs=[
                # weight block only changes on the (outer, slow) K axis;
                # single-buffer it when it is fully grid-invariant.
                _block_spec((block_k, Ca), lambda i, j: (i, 0),
                            buf1 if grid_k == 1 else None),
                pl.BlockSpec((Ca, tile_m), lambda i, j: (0, j)),
            ],
            out_specs=pl.BlockSpec((block_k, tile_m), lambda i, j: (i, j)),
        ),
        compiler_params=pltpu.CompilerParams(
            dimension_semantics=("parallel", "parallel"),
            vmem_limit_bytes=_VMEM_LIMIT_BYTES,
        ),
    )(w_aug, x_aug)


# ----------------------------------------------------------------------------
# Kernel 2: low-rank two-stage path (used when Cin > k^2 * Cout)
#   stage 1: one layer-0 patch position  (Cout, Cin+1) @ (Cin+1, tm)
#   stage 2: composed remaining layers   (K2, Cout)    @ (Cout, tm) + bias
# ----------------------------------------------------------------------------
def _two_stage_kernel(kkq, cmid, k2, w0_ref, wr_ref, br_ref, x_ref, o_ref):
    xv = x_ref[...]                         # (Cin+1, tm) bf16
    wr = wr_ref[...]                        # (K2, Cout)  bf16
    br = br_ref[...]                        # (K2, 1)     f32
    for g in range(kkq):                    # kkq = k^2 (static, small)
        hg = jnp.dot(w0_ref[g * cmid:(g + 1) * cmid, :], xv,
                     preferred_element_type=jnp.float32)          # (Cout, tm)
        og = jnp.dot(wr, hg.astype(jnp.bfloat16),
                     preferred_element_type=jnp.float32) + br     # (K2, tm)
        o_ref[g * k2:(g + 1) * k2, :] = og.astype(o_ref.dtype)


def _two_stage_pixel_matmul(w0_aug, wr_mat, br_col, x_aug, *, kkq, tile_m):
    hd, ca = w0_aug.shape
    k2, cmid = wr_mat.shape
    K = kkq * k2
    M = x_aug.shape[1]
    assert M % tile_m == 0 and tile_m % 128 == 0
    grid_m = M // tile_m
    buf1 = _buffered_one()
    kernel = functools.partial(_two_stage_kernel, kkq, cmid, k2)
    return pl.pallas_call(
        kernel,
        out_shape=jax.ShapeDtypeStruct((K, M), jnp.bfloat16),
        grid_spec=pltpu.PrefetchScalarGridSpec(
            num_scalar_prefetch=0,
            grid=(grid_m,),
            in_specs=[
                _block_spec((hd, ca), lambda i: (0, 0), buf1),
                _block_spec((k2, cmid), lambda i: (0, 0), buf1),
                _block_spec((k2, 1), lambda i: (0, 0), buf1),
                pl.BlockSpec((ca, tile_m), lambda i: (0, i)),
            ],
            out_specs=pl.BlockSpec((K, tile_m), lambda i: (0, i)),
        ),
        compiler_params=pltpu.CompilerParams(
            dimension_semantics=("parallel",),
            vmem_limit_bytes=_VMEM_LIMIT_BYTES,
        ),
    )(w0_aug, wr_mat, br_col, x_aug)


# ----------------------------------------------------------------------------
# Offline (trace-time, f32) composition of k==stride transposed convs
# ----------------------------------------------------------------------------
def _compose_chain(layers, kk):
    """Fold a chain of k==stride ConvTranspose2d layers into one per-pixel map.
    layers: [(w (Cp, Cn, kk, kk), b (Cn,)), ...]  (torch ConvTranspose2d layout)
    Returns W (C0, P, P, CL), b (P, P, CL), P = kk**len(layers)."""
    w0, b0 = layers[0]
    W = jnp.transpose(w0, (0, 2, 3, 1))                  # (C0, kk, kk, C1)
    b = jnp.broadcast_to(b0, (kk, kk, b0.shape[0]))
    for wl, bl in layers[1:]:
        C0, PH, PW, _ = W.shape
        Cn = wl.shape[1]
        W = jnp.einsum("cpqo,oekl->cpkqle", W, wl).reshape(C0, PH * kk, PW * kk, Cn)
        b = jnp.einsum("pqo,oekl->pkqle", b, wl).reshape(PH * kk, PW * kk, Cn) + bl
    return W, b


# ----------------------------------------------------------------------------
# UnetrPrUpBlock forward (conv_block=False path)
# ----------------------------------------------------------------------------
def unetr_pr_up_block_forward(x_nchw, params, upsample_kernel_size):
    """x_nchw: (N, Cin, H, W) -> (N, Cout, H*P, W*P), P = k^(num_layer+1)."""
    kk = int(upsample_kernel_size)
    kkq = kk * kk
    N, Cin, H, Wd = x_nchw.shape
    layers = [params["init"]] + list(params["blocks"])
    num_layer = len(params["blocks"])
    Cout = params["init"][0].shape[1]
    P = kk ** (num_layer + 1)
    K = P * P * Cout
    out_dtype = x_nchw.dtype

    # Pixels on the 128-lane axis; the trailing ones-row carries the bias so
    # the kernel is a single dot (no lane-padded (K,1) bias operand in VMEM).
    # TODO(synk): the transpose/pad of x could be folded into the BlockSpec by
    # gridding over N; it is ~K/Cin times smaller than the output, so skipped.
    M = N * H * Wd
    x_t = jnp.transpose(x_nchw, (1, 0, 2, 3)).reshape(Cin, M)
    x_aug = jnp.concatenate([x_t, jnp.ones((1, M), x_t.dtype)],
                            axis=0).astype(jnp.bfloat16)

    use_two_stage = num_layer >= 1 and Cin > kkq * Cout
    out_rows = K if use_two_stage else min(K, _BLOCK_K_CAP)
    per_col_bytes = 2 * 2 * (Cin + 1) + 2 * 2 * out_rows   # dbl-buf bf16 x + out
    tm = _select_tile_m(M, per_col_bytes, _STREAM_VMEM_BUDGET)
    m_pad = _round_up(M, tm)
    if m_pad != M:
        x_aug = jnp.pad(x_aug, ((0, 0), (0, m_pad - M)))

    if not use_two_stage:
        # Single composed per-pixel matmul for all (num_layer+1) layers.
        Wc, bc = _compose_chain(layers, kk)              # (Cin,P,P,Cout),(P,P,Cout)
        w_mat = jnp.transpose(Wc, (1, 2, 3, 0)).reshape(K, Cin)
        w_aug = jnp.concatenate([w_mat, bc.reshape(K, 1)],
                                axis=1).astype(jnp.bfloat16)
        block_k = _select_block_k(K, _BLOCK_K_CAP)
        y = _fused_pixel_matmul(w_aug, x_aug, block_k=block_k, tile_m=tm)
        # bf16 scatter (rows ordered (ph, pw, co)); final cast fuses in.
        y = y[:, :M].reshape(P, P, Cout, N, H, Wd)
        y = jnp.transpose(y, (3, 2, 4, 0, 5, 1)).reshape(N, Cout, H * P, Wd * P)
        return y.astype(out_dtype)

    # Low-rank two-stage path: layer 0 (x -> k^2*Cout hidden per pixel), then
    # the composed remaining layers.  Output rows ordered (ph0, pw0, ph1, pw1, co).
    w0, b0 = layers[0]                                    # (Cin,Cout,kk,kk),(Cout,)
    w0_mat = jnp.transpose(w0, (2, 3, 1, 0)).reshape(kkq * Cout, Cin)
    b0_col = jnp.broadcast_to(b0, (kk, kk, Cout)).reshape(kkq * Cout, 1)
    w0_aug = jnp.concatenate([w0_mat, b0_col], axis=1).astype(jnp.bfloat16)

    Wr, br = _compose_chain(layers[1:], kk)               # (Cout,P1,P1,Cout),(P1,P1,Cout)
    P1 = Wr.shape[1]
    K2 = P1 * P1 * Cout
    wr_mat = jnp.transpose(Wr, (1, 2, 3, 0)).reshape(K2, Cout).astype(jnp.bfloat16)
    br_col = br.reshape(K2, 1).astype(jnp.float32)

    y = _two_stage_pixel_matmul(w0_aug, wr_mat, br_col, x_aug, kkq=kkq, tile_m=tm)
    y = y[:, :M].reshape(kk, kk, P1, P1, Cout, N, H, Wd)
    y = jnp.transpose(y, (5, 4, 6, 0, 2, 7, 1, 3)).reshape(N, Cout, H * P, Wd * P)
    return y.astype(out_dtype)


# ----------------------------------------------------------------------------
# Deterministic parameter init (shapes follow nn.ConvTranspose2d)
# ----------------------------------------------------------------------------
def init_params(key, in_channels, out_channels, num_layer, kk):
    keys = jax.random.split(key, 2 * (num_layer + 1))
    scale = 0.1
    w0 = scale * jax.random.normal(
        keys[0], (in_channels, out_channels, kk, kk), jnp.float32)
    b0 = scale * jax.random.normal(keys[1], (out_channels,), jnp.float32)
    blocks = []
    for i in range(num_layer):
        w = scale * jax.random.normal(
            keys[2 + 2 * i], (out_channels, out_channels, kk, kk), jnp.float32)
        b = scale * jax.random.normal(
            keys[3 + 2 * i], (out_channels,), jnp.float32)
        blocks.append((w, b))
    return {"init": (w0, b0), "blocks": blocks}


# ----------------------------------------------------------------------------
# Pure-JAX f32 per-layer reference (for correctness of the fused Pallas path)
# ----------------------------------------------------------------------------
def _ref_layer(x_nhwc, w, b, kk):
    N, H, W, Cin = x_nhwc.shape
    y = jnp.einsum("nhwc,cokl->nhwklo", x_nhwc, w) + b    # (N,H,W,kk,kk,Cout)
    return jnp.transpose(y, (0, 1, 3, 2, 4, 5)).reshape(
        N, kk * H, kk * W, w.shape[1])


def reference_forward(x_nchw, params, kk):
    x = jnp.transpose(x_nchw, (0, 2, 3, 1))
    w0, b0 = params["init"]
    x = _ref_layer(x, w0, b0, kk)
    for w, b in params["blocks"]:
        x = _ref_layer(x, w, b, kk)
    return jnp.transpose(x, (0, 3, 1, 2))


if __name__ == "__main__":
    # TODO(synk): conv_block=True path (UnetResBlock w/ instance-norm) not
    # implemented; the module default conv_block=False path is what is fused.
    _buffered_one()   # probe Buffered(1) support once, outside jit

    fwd = jax.jit(unetr_pr_up_block_forward,
                  static_argnames=("upsample_kernel_size",))

    key = jax.random.PRNGKey(0)
    k1, k2, k3, k4 = jax.random.split(key, 4)
    configs = [
        # Module config: spatial_dims=2, in=8, out=4, num_layer=2, k=2.
        dict(in_channels=8, out_channels=4, num_layer=2, kk=2,
             x_shape=(2, 8, 16, 16), kp=k1, kx=k2),
        # Cin > k^2*Cout exercises the low-rank two-stage kernel path.
        dict(in_channels=48, out_channels=4, num_layer=1, kk=2,
             x_shape=(2, 48, 8, 8), kp=k3, kx=k4),
    ]

    for cfg in configs:
        params = init_params(cfg["kp"], cfg["in_channels"], cfg["out_channels"],
                             cfg["num_layer"], cfg["kk"])
        x = jax.random.normal(cfg["kx"], cfg["x_shape"], jnp.float32)

        out = jax.block_until_ready(fwd(x, params, upsample_kernel_size=cfg["kk"]))
        ref = jax.block_until_ready(reference_forward(x, params, cfg["kk"]))

        P = cfg["kk"] ** (cfg["num_layer"] + 1)
        assert out.shape == (x.shape[0], cfg["out_channels"],
                             x.shape[2] * P, x.shape[3] * P), out.shape
        assert out.dtype == x.dtype
        # bf16 matmul operands / writeback vs f32 reference -> loose tolerance
        max_err = float(jnp.max(jnp.abs(out - ref)))
        assert jnp.allclose(out, ref, atol=2e-2, rtol=2e-2), max_err

    print("KERNEL_OK")
</pallas_src>

<mosaic_0001>
module attributes {stable_mosaic.version = 11 : i64} {
  func.func @_probe(%arg0: i32, %arg1: memref<8x128xf32, #tpu.memory_space<vmem>>, %arg2: memref<8x128xf32, #tpu.memory_space<vmem>>) attributes {dimension_semantics = [#tpu.dimension_semantics<arbitrary>], iteration_bounds = array<i64: 1>, scalar_prefetch = 0 : i64, scratch_operands = 0 : i64, tpu.core_type = #tpu.core_type<tc>, window_params = [{pipeline_mode = #tpu.pipeline_mode<synchronous>, transform_indices = @transform_0, window_bounds = array<i64: 8, 128>}, {pipeline_mode = #tpu.pipeline_mode<synchronous>, transform_indices = @transform_1, window_bounds = array<i64: 8, 128>}]} {
    %c0 = arith.constant 0 : index
    %c0_0 = arith.constant 0 : index
    %0 = vector.load %arg1[%c0, %c0_0] : memref<8x128xf32, #tpu.memory_space<vmem>>, vector<8x128xf32>
    %c0_1 = arith.constant 0 : index
    %c0_2 = arith.constant 0 : index
    %1 = vector.load %arg2[%c0_1, %c0_2] : memref<8x128xf32, #tpu.memory_space<vmem>>, vector<8x128xf32>
    tpu.vector_store %arg2[%c0_1, %c0_2], %0 {strides = array<i32>} : memref<8x128xf32, #tpu.memory_space<vmem>>, vector<8x128xf32>,
    return
  }
  func.func @transform_0(%arg0: i32) -> (i32, i32) {
    %c0_i32 = arith.constant 0 : i32
    %c0_i32_0 = arith.constant 0 : i32
    %c0_i32_1 = arith.constant 0 : i32
    return %c0_i32, %c0_i32_0 : i32, i32
  }
  func.func @transform_1(%arg0: i32) -> (i32, i32) {
    %c0_i32 = arith.constant 0 : i32
    %c0_i32_0 = arith.constant 0 : i32
    %c0_i32_1 = arith.constant 0 : i32
    return %c0_i32, %c0_i32_0 : i32, i32
  }
}

module attributes {stable_mosaic.version = 11 : i64} {
  func.func @_fused_matmul_kernel(%arg0: i32, %arg1: i32, %arg2: memref<256x9xbf16, #tpu.memory_space<vmem>>, %arg3: memref<9x256xbf16, #tpu.memory_space<vmem>>, %arg4: memref<256x256xbf16, #tpu.memory_space<vmem>>) attributes {dimension_semantics = [#tpu.dimension_semantics<parallel>, #tpu.dimension_semantics<parallel>], iteration_bounds = array<i64: 1, 2>, scalar_prefetch = 0 : i64, scratch_operands = 0 : i64, tpu.core_type = #tpu.core_type<tc>, window_params = [{transform_indices = @transform_0, window_bounds = array<i64: 256, 9>}, {transform_indices = @transform_1, window_bounds = array<i64: 9, 256>}, {transform_indices = @transform_2, window_bounds = array<i64: 256, 256>}]} {
    %c0 = arith.constant 0 : index
    %c0_0 = arith.constant 0 : index
    %0 = vector.load %arg2[%c0, %c0_0] : memref<256x9xbf16, #tpu.memory_space<vmem>>, vector<256x9xbf16>
    %c0_1 = arith.constant 0 : index
    %c0_2 = arith.constant 0 : index
    %1 = vector.load %arg3[%c0_1, %c0_2] : memref<9x256xbf16, #tpu.memory_space<vmem>>, vector<9x256xbf16>
    %cst = arith.constant dense<0.000000e+00> : vector<256x256xf32>
    %2 = tpu.matmul %0, %1, %cst {dimension_numbers = #tpu.dot_dimension_numbers<[1], [0], [0], [1], [0, 0, 1, 1], [], []>} : vector<256x9xbf16>, vector<9x256xbf16>, vector<256x256xf32> -> vector<256x256xf32>
    %3 = arith.truncf %2 : vector<256x256xf32> to vector<256x256xbf16>
    %c0_3 = arith.constant 0 : index
    %c0_4 = arith.constant 0 : index
    %4 = vector.load %arg4[%c0_3, %c0_4] : memref<256x256xbf16, #tpu.memory_space<vmem>>, vector<256x256xbf16>
    tpu.vector_store %arg4[%c0_3, %c0_4], %3 {strides = array<i32>} : memref<256x256xbf16, #tpu.memory_space<vmem>>, vector<256x256xbf16>,
    return
  }
  func.func @transform_0(%arg0: i32, %arg1: i32) -> (i32, i32) {
    %c0_i32 = arith.constant 0 : i32
    %c0_i32_0 = arith.constant 0 : i32
    return %arg0, %c0_i32 : i32, i32
  }
  func.func @transform_1(%arg0: i32, %arg1: i32) -> (i32, i32) {
    %c0_i32 = arith.constant 0 : i32
    %c0_i32_0 = arith.constant 0 : i32
    return %c0_i32, %arg1 : i32, i32
  }
  func.func @transform_2(%arg0: i32, %arg1: i32) -> (i32, i32) {
    %c0_i32 = arith.constant 0 : i32
    return %arg0, %arg1 : i32, i32
  }
}

</mosaic_0001>

<llo_original>
// kernel: tpu_custom_call.1
$region0: #{tpu_custom_call.1}
  #allocation0 [shape = 'u32[]', space=smem, size = 0x4, offset = 0x4, fixed_abs, tag = 'smem constant byte address 0x4 - core index']
  #allocation1 [shape = 'u32[144,128]{1,0:T(1,128)}', space=vmem, size = 0x12000, scoped, tag = 'internal scratch']
  %s0 = inlined_call_operand.hbm [shape: f32[8,128], index: 0, kind: input, shape index: {}]
  %s1 = inlined_call_operand.hbm [shape: f32[8,128], index: 1, kind: output, shape index: {}]
  %s2 = sld [smem:[#allocation0]]
  $region18: #{tpu_custom_call.1} parent=0
    _
  %s4 = ssub.s32 1, %s2
  %s5 = scalar_select 0, %s4, %s2
  $region1: #{tpu_custom_call.1} parent=0
    #allocation2 [shape = 'u8[4096]{0}', space=vmem, size = 0x1000, scoped, tag = 'input window, operand 0, single buffered']
    #allocation3 [shape = 's32[1]{0}', space=sflag, size = 0x4, scoped, tag = 'scoped memory for tpu_custom_call.1']
    #allocation4 [shape = 's32[1]{0}', space=sflag, size = 0x4, scoped, tag = 'scoped memory for tpu_custom_call.1']
    #allocation5 [shape = 'u8[4096]{0}', space=vmem, size = 0x1000, scoped, tag = 'output window, operand 0, single buffered']
    %6 = vsyncpa [#allocation3], 0
    %7 = vsyncpa [#allocation4], 0
    // Predicated region
    $region2: #{tpu_custom_call.1} parent=1 // pred_check
      _
    $region3: #{tpu_custom_call.1} parent=1 // pred_check_branch
      %9 = sbr.rel (0) target = $region5
    $region4: #{tpu_custom_call.1} parent=1 // pred_region
      %s11 = ssub.s32 128, 128
      %12 = vsyncadd [#allocation3], %s11
      %s14 = sshll.u32 [#allocation2], 4
      %s15 = int_to_ptr.vmem [resolvable:$true] %s14
      %17 = dma.hbm_to_vmem [thread:$0]  %s0, 128, %s15, [#allocation3]
    $region5: #{tpu_custom_call.1} parent=1 // pred_fallthru
      _
    // Predicated region
    $region6: #{tpu_custom_call.1} parent=1 // pred_check
      _
    $region7: #{tpu_custom_call.1} parent=1 // pred_check_branch
      %19 = sbr.rel (0) target = $region9
    $region8: #{tpu_custom_call.1} parent=1 // pred_region
      %20 = dma.done [#allocation3], 128
    $region9: #{tpu_custom_call.1} parent=1 // pred_fallthru
      _
    %v21 = vld [vmem:[#allocation2] sm:$0xff]
    %22 = vst [vmem:[#allocation5] sm:$0xff] %v21
    // Predicated region
    $region10: #{tpu_custom_call.1} parent=1 // pred_check
      _
    $region11: #{tpu_custom_call.1} parent=1 // pred_check_branch
      %24 = sbr.rel (0) target = $region13
    $region12: #{tpu_custom_call.1} parent=1 // pred_region
      %s26 = ssub.s32 128, 128
      %27 = vsyncadd [#allocation4], %s26
      %s29 = sshll.u32 [#allocation5], 4
      %s30 = int_to_ptr.vmem [resolvable:$true] %s29
      %32 = dma.vmem_to_hbm [thread:$0]  %s30, 128, %s1, [#allocation4]
    $region13: #{tpu_custom_call.1} parent=1 // pred_fallthru
      _
    // Predicated region
    $region14: #{tpu_custom_call.1} parent=1 // pred_check
      _
    $region15: #{tpu_custom_call.1} parent=1 // pred_check_branch
      %34 = sbr.rel (0) target = $region17
    $region16: #{tpu_custom_call.1} parent=1 // pred_region
      %35 = dma.done [#allocation4], 128
    $region17: #{tpu_custom_call.1} parent=1 // pred_fallthru
      _
    %36 = vsyncpa [#allocation3], 1
    %37 = vsyncpa [#allocation4], 1

// kernel: unetr_pr_up_block_forward.1
$region0: #{unetr_pr_up_block_forward.1}
  #allocation0 [shape = 'u32[]', space=smem, size = 0x4, offset = 0x4, fixed_abs, tag = 'smem constant byte address 0x4 - core index']
  #allocation1 [shape = 'u32[144,128]{1,0:T(1,128)}', space=vmem, size = 0x12000, scoped, tag = 'internal scratch']
  %s0 = inlined_call_operand.vmem [shape: bf16[256,9], index: 0, kind: input, shape index: {}]
  %s1 = inlined_call_operand.vmem [shape: bf16[9,512], index: 1, kind: input, shape index: {}]
  %s2 = inlined_call_operand.vmem [shape: bf16[256,512], index: 2, kind: output, shape index: {}]
  %s3 = sld [smem:[#allocation0]]
  $region113: #{unetr_pr_up_block_forward.1} parent=0
    _
  %s5 = ssub.s32 1, %s3
  %s6 = scalar_select 0, %s5, %s3
  $region1: #{unetr_pr_up_block_forward.1} parent=0
    #allocation2 [shape = 'u8[16384]{0}', space=vmem, size = 0x4000, scoped, tag = 'input window, operand 1']
    #allocation3 [shape = 'u8[262144]{0}', space=vmem, size = 0x40000, scoped, tag = 'output window, operand 0']
    loop: start=0, step=1, limit=4
    $region2: #{unetr_pr_up_block_forward.1} parent=1 // loop_pre_header
      _
    $region3: #{unetr_pr_up_block_forward.1} parent=1 // loop_header
      %s8 = sphi 0, %s12
      %p9 = scmp.ge.s32.totalorder %s8, 4
      %s15 = sphi 0, %s27
      %s16 = sphi 0, %s23
      %s17 = sphi 0, %s15
      %s18 = sphi 0, %s16
      %s19 = sphi 0, %s17
      %s20 = sphi 0, %s18
      %s30 = sphi 0, %s32
      %s33 = sphi 0, %s30
      %s34 = sphi 0, %s33
      %s50 = sphi 0, %s34
      %s56 = sphi 0, %s58
      %s59 = sphi 0, %s56
      %s60 = sphi 0, %s59
      %s76 = sphi 0, %s60
      %s84 = sphi 0, %s86
      %s87 = sphi 0, %s84
      %s88 = sphi 0, %s87
      %s104 = sphi 0, %s88
    $region4: #{unetr_pr_up_block_forward.1} parent=1 // loop_header_branch
      %11 = sbr.rel (%p9) target = $region8
    $region5: #{unetr_pr_up_block_forward.1} parent=1 // loop_body
      %s13 = ssub.s32 %s8, 1
      %s14 = ssub.s32 %s8, 2
      %s21 = sadd.s32 1, %s16
      %p22 = scmp.ge.s32.totalorder %s21, 2
      %s23 = scalar_select %p22, 0, %s21
      %s24 = sadd.s32 1, %s15
      %s25 = scalar_select %p22, %s24, %s15
      %p26 = scmp.ge.s32.totalorder %s25, 1
      %s27 = scalar_select %p26, 0, %s25
      %s28 = ssub.s32 %s15, %s27
      %p29 = scmp.eq.s32.totalorder %s28, 0
      %s31 = sadd.s32 %s30, 1
      %s32 = scalar_select %p29, %s30, %s31
      %p35 = pneg %p29
      %p36 = scmp.eq.s32.totalorder %s8, 1
      %p37 = por %p35, %p36
      %p38 = scmp.ne.s32.totalorder %s30, %s33
      %p39 = scmp.eq.s32.totalorder %s8, 0
      %p40 = por %p38, %p39
      %p41 = scmp.ne.s32.totalorder %s30, %s33
      %p42 = scmp.eq.s32.totalorder %s13, 1
      %p43 = por %p41, %p42
      %p44 = scmp.ne.s32.totalorder %s33, %s34
      %p45 = scmp.eq.s32.totalorder %s13, 0
      %p46 = por %p44, %p45
      %p47 = scmp.ne.s32.totalorder %s33, %s34
      %p48 = scmp.eq.s32.totalorder %s14, 1
      %p49 = por %p47, %p48
      %p51 = scmp.ne.s32.totalorder %s34, %s50
      %p52 = scmp.eq.s32.totalorder %s14, 0
      %p53 = por %p51, %p52
      %s54 = ssub.s32 %s16, %s23
      %p55 = scmp.eq.s32.totalorder %s54, 0
      %s57 = sadd.s32 %s56, 1
      %s58 = scalar_select %p55, %s56, %s57
      %p61 = pneg %p55
      %p62 = scmp.eq.s32.totalorder %s8, 1
      %p63 = por %p61, %p62
      %p64 = scmp.ne.s32.totalorder %s56, %s59
      %p65 = scmp.eq.s32.totalorder %s8, 0
      %p66 = por %p64, %p65
      %p67 = scmp.ne.s32.totalorder %s56, %s59
      %p68 = scmp.eq.s32.totalorder %s13, 1
      %p69 = por %p67, %p68
      %p70 = scmp.ne.s32.totalorder %s59, %s60
      %p71 = scmp.eq.s32.totalorder %s13, 0
      %p72 = por %p70, %p71
      %p73 = scmp.ne.s32.totalorder %s59, %s60
      %p74 = scmp.eq.s32.totalorder %s14, 1
      %p75 = por %p73, %p74
      %p77 = scmp.ne.s32.totalorder %s60, %s76
      %p78 = scmp.eq.s32.totalorder %s14, 0
      %p79 = por %p77, %p78
      %s80 = ssub.s32 %s15, %s27
      %s81 = ssub.s32 %s16, %s23
      %s82 = sor.u32 %s80, %s81
      %p83 = scmp.eq.s32.totalorder %s82, 0
      %s85 = sadd.s32 %s84, 1
      %s86 = scalar_select %p83, %s84, %s85
      %p89 = pneg %p83
      %p90 = scmp.eq.s32.totalorder %s8, 1
      %p91 = por %p89, %p90
      %p92 = scmp.ne.s32.totalorder %s84, %s87
      %p93 = scmp.eq.s32.totalorder %s8, 0
      %p94 = por %p92, %p93
      %p95 = scmp.ne.s32.totalorder %s84, %s87
      %p96 = scmp.eq.s32.totalorder %s13, 1
      %p97 = por %p95, %p96
      %p98 = scmp.ne.s32.totalorder %s87, %s88
      %p99 = scmp.eq.s32.totalorder %s13, 0
      %p100 = por %p98, %p99
      %p101 = scmp.ne.s32.totalorder %s87, %s88
      %p102 = scmp.eq.s32.totalorder %s14, 1
      %p103 = por %p101, %p102
      %p105 = scmp.ne.s32.totalorder %s88, %s104
      %p106 = scmp.eq.s32.totalorder %s14, 0
      %p107 = por %p105, %p106
      %p108 = scmp.le.s32.totalorder 1, %s8
      %p109 = scmp.lt.s32.totalorder %s8, 3
      %p110 = pnand %p108, %p109
      %p111 = pneg %p110
      // Predicated region
      $region9: #{unetr_pr_up_block_forward.1} parent=5 // pred_check
        _
      $region10: #{unetr_pr_up_block_forward.1} parent=5 // pred_check_branch
        %113 = sbr.rel (%p110) target = $region12
      $region11: #{unetr_pr_up_block_forward.1} parent=5 // pred_region
        %s114 = ssub.s32 %s8, 1
        // Predicated region
        $region13: #{unetr_pr_up_block_forward.1} parent=11 // pred_check
          %p115 = pneg %p46
        $region14: #{unetr_pr_up_block_forward.1} parent=11 // pred_check_branch
          %117 = sbr.rel (%p115) target = $region16
        $region15: #{unetr_pr_up_block_forward.1} parent=11 // pred_region
          %s118 = smul.u32 32, %s17
          %p119 = scmp.lt.s32.totalorder %s118, 31
          %s120 = scalar_select %p119, %s118, 31
          %s121 = smul.addr %s120, 4
          %s122 = scalar_lea.vmem %s0, %s121
          %s123 = smul.u32 32, %s17
        $region16: #{unetr_pr_up_block_forward.1} parent=11 // pred_fallthru
          _
      $region12: #{unetr_pr_up_block_forward.1} parent=5 // pred_fallthru
        _
      %p124 = scmp.lt.s32.totalorder %s8, 2
      // Predicated region
      $region17: #{unetr_pr_up_block_forward.1} parent=5 // pred_check
        %p125 = pneg %p124
      $region18: #{unetr_pr_up_block_forward.1} parent=5 // pred_check_branch
        %127 = sbr.rel (%p125) target = $region20
      $region19: #{unetr_pr_up_block_forward.1} parent=5 // pred_region
        // Predicated region
        $region21: #{unetr_pr_up_block_forward.1} parent=19 // pred_check
          %p128 = pneg %p66
        $region22: #{unetr_pr_up_block_forward.1} parent=19 // pred_check_branch
          %130 = sbr.rel (%p128) target = $region24
        $region23: #{unetr_pr_up_block_forward.1} parent=19 // pred_region
          %s131 = sand.u32 %s56, 1
          %s132 = sand.u32 %s56, 1
          %s133 = smul.addr %s132, 16
          %s134 = scalar_lea.vmem [#allocation2], %s133
          %s135 = smul.u32 2, %s16
          %s136 = smul.addr %s135, 4
          %s137 = scalar_lea.vmem %s1, %s136
          // Predicated region
          $region25: #{unetr_pr_up_block_forward.1} parent=23 // pred_check
            _
          $region26: #{unetr_pr_up_block_forward.1} parent=23 // pred_check_branch
            %139 = sbr.rel (0) target = $region28
          $region27: #{unetr_pr_up_block_forward.1} parent=23 // pred_region
            // Predicated region
            $region29: #{unetr_pr_up_block_forward.1} parent=27 // pred_check
              _
            $region30: #{unetr_pr_up_block_forward.1} parent=27 // pred_check_branch
              %141 = sbr.rel (0) target = $region32
            $region31: #{unetr_pr_up_block_forward.1} parent=27 // pred_region
              // Predicated region
              $region44: #{unetr_pr_up_block_forward.1} parent=31 // pred_check
                _
              $region45: #{unetr_pr_up_block_forward.1} parent=31 // pred_check_branch
                %158 = sbr.rel (0) target = $region47
              $region46: #{unetr_pr_up_block_forward.1} parent=31 // pred_region
                loop: start=0, step=1, limit=1
                $region48: #{unetr_pr_up_block_forward.1} parent=46 // loop_pre_header
                  _
                $region49: #{unetr_pr_up_block_forward.1} parent=46 // loop_header
                  %s160 = sphi 0, %s164
                  %p161 = scmp.ge.s32.totalorder %s160, 1
                  %s165 = sphi %s137, %s137
                  %s166 = sphi %s134, %s134
                $region50: #{unetr_pr_up_block_forward.1} parent=46 // loop_header_branch
                  %163 = sbr.rel (%p161) target = $region54
                $region51: #{unetr_pr_up_block_forward.1} parent=46 // loop_body
                  %v167 = vld [vmem:[%s165] sm:$0xff]
                  %168 = vst [vmem:[%s166] sm:$0xff] %v167
                  %v169 = vld [vmem:[%s165 + $0x10] sm:$0xff]
                  %170 = vst [vmem:[%s166 + $0x8] sm:$0xff] %v169
                $region52: #{unetr_pr_up_block_forward.1} parent=46 // loop_footer
                  %s164 = sadd.s32 1, %s160
                $region53: #{unetr_pr_up_block_forward.1} parent=46 // loop_footer_branch
                  %159 = sbr.rel target = $region49
                $region54: #{unetr_pr_up_block_forward.1} parent=46 // loop_exit
                  _
              $region47: #{unetr_pr_up_block_forward.1} parent=31 // pred_fallthru
                _
              // Predicated region
              $region55: #{unetr_pr_up_block_forward.1} parent=31 // pred_check
                _
              $region56: #{unetr_pr_up_block_forward.1} parent=31 // pred_check_branch
                %172 = sbr.rel target = $region58
              $region57: #{unetr_pr_up_block_forward.1} parent=31 // pred_region
                _
              $region58: #{unetr_pr_up_block_forward.1} parent=31 // pred_fallthru
                _
            $region32: #{unetr_pr_up_block_forward.1} parent=27 // pred_fallthru
              _
            // Predicated region
            $region33: #{unetr_pr_up_block_forward.1} parent=27 // pred_check
              _
            $region34: #{unetr_pr_up_block_forward.1} parent=27 // pred_check_branch
              %143 = sbr.rel target = $region36
            $region35: #{unetr_pr_up_block_forward.1} parent=27 // pred_region
              loop: start=0, step=1, limit=1
              $region37: #{unetr_pr_up_block_forward.1} parent=35 // loop_pre_header
                _
              $region38: #{unetr_pr_up_block_forward.1} parent=35 // loop_header
                %s146 = sphi 0, %s150
                %p147 = scmp.ge.s32.totalorder %s146, 1
                %s151 = sphi %s137, %s137
                %s152 = sphi %s134, %s134
              $region39: #{unetr_pr_up_block_forward.1} parent=35 // loop_header_branch
                %149 = sbr.rel (%p147) target = $region43
              $region40: #{unetr_pr_up_block_forward.1} parent=35 // loop_body
                %v153 = vld [vmem:[%s151] sm:$0xff]
                %154 = vst [vmem:[%s152] sm:$0xff] %v153
                %v155 = vld [vmem:[%s151 + $0x10] sm:$0xff]
                %156 = vst [vmem:[%s152 + $0x8] sm:$0xff] %v155
              $region41: #{unetr_pr_up_block_forward.1} parent=35 // loop_footer
                %s150 = sadd.s32 1, %s146
              $region42: #{unetr_pr_up_block_forward.1} parent=35 // loop_footer_branch
                %145 = sbr.rel target = $region38
              $region43: #{unetr_pr_up_block_forward.1} parent=35 // loop_exit
                _
            $region36: #{unetr_pr_up_block_forward.1} parent=27 // pred_fallthru
              _
          $region28: #{unetr_pr_up_block_forward.1} parent=23 // pred_fallthru
            _
          %173 = vnop
        $region24: #{unetr_pr_up_block_forward.1} parent=19 // pred_fallthru
          _
      $region20: #{unetr_pr_up_block_forward.1} parent=5 // pred_fallthru
        _
      %p174 = scmp.le.s32.totalorder 1, %s8
      %p175 = scmp.lt.s32.totalorder %s8, 3
      %p176 = pnand %p174, %p175
      %p177 = pneg %p176
      // Predicated region
      $region59: #{unetr_pr_up_block_forward.1} parent=5 // pred_check
        _
      $region60: #{unetr_pr_up_block_forward.1} parent=5 // pred_check_branch
        %179 = sbr.rel (%p176) target = $region62
      $region61: #{unetr_pr_up_block_forward.1} parent=5 // pred_region
        %s180 = ssub.s32 %s8, 1
        %s181 = sand.u32 %s59, 1
        %s182 = sand.u32 %s59, 1
        %s183 = smul.addr %s182, 16
        %s184 = scalar_lea.vmem [#allocation2], %s183
        // Predicated region
        $region63: #{unetr_pr_up_block_forward.1} parent=61 // pred_check
          %p185 = pneg %p72
        $region64: #{unetr_pr_up_block_forward.1} parent=61 // pred_check_branch
          %187 = sbr.rel (%p185) target = $region66
        $region65: #{unetr_pr_up_block_forward.1} parent=61 // pred_region
          _
        $region66: #{unetr_pr_up_block_forward.1} parent=61 // pred_fallthru
          _
        %s188 = smul.u32 32, %s17
        %p189 = scmp.lt.s32.totalorder %s188, 31
        %s190 = scalar_select %p189, %s188, 31
        %s191 = smul.addr %s190, 4
        %s192 = scalar_lea.vmem %s0, %s191
        %p193 = pneg %p46
        %p194 = pneg %p43
        %s195 = sand.u32 %s59, 1
        %s196 = sand.u32 %s59, 1
        %s197 = smul.addr %s196, 16
        %s198 = scalar_lea.vmem [#allocation2], %s197
        %p199 = pneg %p72
        %p200 = pneg %p69
        %p201 = pneg %p100
        %p202 = pneg %p97
        %s203 = sand.u32 %s87, 1
        %s204 = sand.u32 %s87, 1
        %s205 = smul.addr %s204, 256
        %s206 = scalar_lea.vmem [#allocation3], %s205
        %s207 = smul.u32 32, %s17
        %p208 = scmp.lt.s32.totalorder %s207, 31
        %s209 = scalar_select %p208, %s207, 31
        %s210 = smul.addr %s209, 4
        %s211 = scalar_lea.vmem %s0, %s210
        %s212 = smul.u32 32, %s17
        %s213 = smul.u32 2, %s18
        %s214 = smul.u32 32, %s17
        %s215 = smul.u32 2, %s18
        %v217 = vld [vmem:[%s211] sm:$0xf]
        %v218 = vld [vmem:[%s211 + $0x4] sm:$0xf]
        %v219 = vld [vmem:[%s211 + $0x8] sm:$0xf]
        %v220 = vld [vmem:[%s211 + $0xc] sm:$0xf]
        %v221 = vld [vmem:[%s211 + $0x10] sm:$0xf]
        %v222 = vld [vmem:[%s211 + $0x14] sm:$0xf]
        %v223 = vld [vmem:[%s211 + $0x18] sm:$0xf]
        %v224 = vld [vmem:[%s211 + $0x1c] sm:$0xf]
        %v225 = vld [vmem:[%s211 + $0x20] sm:$0xf]
        %v226 = vld [vmem:[%s211 + $0x24] sm:$0xf]
        %v227 = vld [vmem:[%s211 + $0x28] sm:$0xf]
        %v228 = vld [vmem:[%s211 + $0x2c] sm:$0xf]
        %v229 = vld [vmem:[%s211 + $0x30] sm:$0xf]
        %v230 = vld [vmem:[%s211 + $0x34] sm:$0xf]
        %v231 = vld [vmem:[%s211 + $0x38] sm:$0xf]
        %v232 = vld [vmem:[%s211 + $0x3c] sm:$0xf]
        %v233 = vld [vmem:[%s211 + $0x40] sm:$0xf]
        %v234 = vld [vmem:[%s211 + $0x44] sm:$0xf]
        %v235 = vld [vmem:[%s211 + $0x48] sm:$0xf]
        %v236 = vld [vmem:[%s211 + $0x4c] sm:$0xf]
        %v237 = vld [vmem:[%s211 + $0x50] sm:$0xf]
        %v238 = vld [vmem:[%s211 + $0x54] sm:$0xf]
        %v239 = vld [vmem:[%s211 + $0x58] sm:$0xf]
        %v240 = vld [vmem:[%s211 + $0x5c] sm:$0xf]
        %v241 = vld [vmem:[%s211 + $0x60] sm:$0xf]
        %v242 = vld [vmem:[%s211 + $0x64] sm:$0xf]
        %v243 = vld [vmem:[%s211 + $0x68] sm:$0xf]
        %v244 = vld [vmem:[%s211 + $0x6c] sm:$0xf]
        %v245 = vld [vmem:[%s211 + $0x70] sm:$0xf]
        %v246 = vld [vmem:[%s211 + $0x74] sm:$0xf]
        %v247 = vld [vmem:[%s211 + $0x78] sm:$0xf]
        %v248 = vld [vmem:[%s211 + $0x7c] sm:$0xf]
        %v249 = vld [vmem:[%s184] sm:$0xff]
        %v250 = vld [vmem:[%s184 + $0x8] sm:$0x11]
        %v283 = vunpack.c.l.b16 %v217
        %v284 = vunpack.c.l.b16 %v218
        %v285 = vunpack.c.l.b16 %v219
        %v286 = vunpack.c.l.b16 %v220
        %v287 = vunpack.c.l.b16 %v221
        %v288 = vunpack.c.l.b16 %v222
        %v289 = vunpack.c.l.b16 %v223
        %v290 = vunpack.c.l.b16 %v224
        %v291 = vunpack.c.l.b16 %v225
        %v292 = vunpack.c.l.b16 %v226
        %v293 = vunpack.c.l.b16 %v227
        %v294 = vunpack.c.l.b16 %v228
        %v295 = vunpack.c.l.b16 %v229
        %v296 = vunpack.c.l.b16 %v230
        %v297 = vunpack.c.l.b16 %v231
        %v298 = vunpack.c.l.b16 %v232
        %v299 = vunpack.c.l.b16 %v233
        %v300 = vunpack.c.l.b16 %v234
        %v301 = vunpack.c.l.b16 %v235
        %v302 = vunpack.c.l.b16 %v236
        %v303 = vunpack.c.l.b16 %v237
        %v304 = vunpack.c.l.b16 %v238
        %v305 = vunpack.c.l.b16 %v239
        %v306 = vunpack.c.l.b16 %v240
        %v307 = vunpack.c.l.b16 %v241
        %v308 = vunpack.c.l.b16 %v242
        %v309 = vunpack.c.l.b16 %v243
        %v310 = vunpack.c.l.b16 %v244
        %v311 = vunpack.c.l.b16 %v245
        %v312 = vunpack.c.l.b16 %v246
        %v313 = vunpack.c.l.b16 %v247
        %v314 = vunpack.c.l.b16 %v248
        %v315 = vpack.c.b16 %v284, %v283
        %v316 = vpack.c.b16 %v286, %v285
        %v317 = vpack.c.b16 %v288, %v287
        %v318 = vpack.c.b16 %v290, %v289
        %v319 = vpack.c.b16 %v292, %v291
        %v320 = vpack.c.b16 %v294, %v293
        %v321 = vpack.c.b16 %v296, %v295
        %v322 = vpack.c.b16 %v298, %v297
        %v323 = vpack.c.b16 %v300, %v299
        %v324 = vpack.c.b16 %v302, %v301
        %v325 = vpack.c.b16 %v304, %v303
        %v326 = vpack.c.b16 %v306, %v305
        %v327 = vpack.c.b16 %v308, %v307
        %v328 = vpack.c.b16 %v310, %v309
        %v329 = vpack.c.b16 %v312, %v311
        %v330 = vpack.c.b16 %v314, %v313
        %v333 = vunpack.c.l.b16 %v249
        %v334 = vunpack.c.h.b16 %v249
        %v335 = vunpack.c.l.b16 %v250
        %v336 = vunpack.c.h.b16 %v250
        %v337 = vpack.c.b16 %v335, %v333
        %v338 = vpack.c.b16 %v336, %v334
        %vm339 = vcmask 72704
        %v341 = vsel %vm339, %v315, 0
        %v344 = vsel %vm339, %v316, 0
        %v347 = vsel %vm339, %v317, 0
        %v350 = vsel %vm339, %v318, 0
        %v353 = vsel %vm339, %v319, 0
        %v356 = vsel %vm339, %v320, 0
        %v359 = vsel %vm339, %v321, 0
        %v362 = vsel %vm339, %v322, 0
        %v365 = vsel %vm339, %v323, 0
        %v368 = vsel %vm339, %v324, 0
        %v371 = vsel %vm339, %v325, 0
        %v374 = vsel %vm339, %v326, 0
        %v377 = vsel %vm339, %v327, 0
        %v380 = vsel %vm339, %v328, 0
        %v383 = vsel %vm339, %v329, 0
        %v386 = vsel %vm339, %v330, 0
        %vm388 = vcmask 1043456
        %vm389 = vcmask 1044480
        %v390 = vsel %vm388, 4294967295, 65535
        %v391 = vsel %vm389, %v390, 0
        %v393 = vand.u32 %v337, %v391
        %v396 = vand.u32 %v338, %v391
        %398 = vmatprep.subr.bf16.mxu0 %v396
        %399 = vmatpush1.bf16.msra.mxu0 %v393
        %400 = vmatprep.subr.bf16.mxu0 0
        %401 = vmatpush1.bf16.msra.mxu0 0
        %402 = vmatprep.subr.bf16.mxu0 0
        %403 = vmatpush1.bf16.msra.mxu0 0
        %404 = vmatprep.subr.bf16.mxu0 0
        %405 = vmatpush1.bf16.msra.mxu0 0
        %406 = vmatprep.subr.bf16.mxu0 0
        %407 = vmatpush1.bf16.msra.mxu0 0
        %408 = vmatprep.subr.bf16.mxu0 0
        %409 = vmatpush1.bf16.msra.mxu0 0
        %410 = vmatprep.subr.bf16.mxu0 0
        %411 = vmatpush1.bf16.msra.mxu0 0
        %412 = vmatprep.subr.bf16.mxu0 0
        %413 = vmatpush1.bf16.msra.mxu0 0
        %414 = vmatprep.subr.bf16.mxu0 0
        %415 = vmatpush1.bf16.msra.mxu0 0
        %416 = vmatprep.subr.bf16.mxu0 0
        %417 = vmatpush1.bf16.msra.mxu0 0
        %418 = vmatprep.subr.bf16.mxu0 0
        %419 = vmatpush1.bf16.msra.mxu0 0
        %420 = vmatprep.subr.bf16.mxu0 0
        %421 = vmatpush1.bf16.msra.mxu0 0
        %422 = vmatprep.subr.bf16.mxu0 0
        %423 = vmatpush1.bf16.msra.mxu0 0
        %424 = vmatprep.subr.bf16.mxu0 0
        %425 = vmatpush1.bf16.msra.mxu0 0
        %426 = vmatprep.subr.bf16.mxu0 0
        %427 = vmatpush1.bf16.msra.mxu0 0
        %428 = vmatprep.subr.bf16.mxu0 0
        %429 = vmatpush1.bf16.msra.mxu0 0
        %430 = vmatprep.mubr.bf16.mxu0 0
        %431 = vmatmul.mubr.bf16.gmra.mrb[0].mxu0 %v341
        %v432 = vpop.f32.mrb[0].mxu0
        %v433 = vadd.f32 0.0, %v432
        %v434 = vpop.f32.mrb[0].mxu0
        %v435 = vadd.f32 0.0, %v434
        %v436 = vpop.f32.mrb[0].mxu0
        %v437 = vadd.f32 0.0, %v436
        %v438 = vpop.f32.mrb[0].mxu0
        %v439 = vadd.f32 0.0, %v438
        %440 = vmatprep.mubr.bf16.mxu0 0
        %441 = vmatmul.mubr.bf16.gmra.mrb[0].mxu0 %v344
        %v442 = vpop.f32.mrb[0].mxu0
        %v443 = vadd.f32 0.0, %v442
        %v444 = vpop.f32.mrb[0].mxu0
        %v445 = vadd.f32 0.0, %v444
        %v446 = vpop.f32.mrb[0].mxu0
        %v447 = vadd.f32 0.0, %v446
        %v448 = vpop.f32.mrb[0].mxu0
        %v449 = vadd.f32 0.0, %v448
        %450 = vmatprep.mubr.bf16.mxu0 0
        %451 = vmatmul.mubr.bf16.gmra.mrb[0].mxu0 %v347
        %v452 = vpop.f32.mrb[0].mxu0
        %v453 = vadd.f32 0.0, %v452
        %v454 = vpop.f32.mrb[0].mxu0
        %v455 = vadd.f32 0.0, %v454
        %v456 = vpop.f32.mrb[0].mxu0
        %v457 = vadd.f32 0.0, %v456
        %v458 = vpop.f32.mrb[0].mxu0
        %v459 = vadd.f32 0.0, %v458
        %460 = vmatprep.mubr.bf16.mxu0 0
        %461 = vmatmul.mubr.bf16.gmra.mrb[0].mxu0 %v350
        %v462 = vpop.f32.mrb[0].mxu0
        %v463 = vadd.f32 0.0, %v462
        %v464 = vpop.f32.mrb[0].mxu0
        %v465 = vadd.f32 0.0, %v464
        %v466 = vpop.f32.mrb[0].mxu0
        %v467 = vadd.f32 0.0, %v466
        %v468 = vpop.f32.mrb[0].mxu0
        %v469 = vadd.f32 0.0, %v468
        %470 = vmatprep.mubr.bf16.mxu0 0
        %471 = vmatmul.mubr.bf16.gmra.mrb[0].mxu0 %v353
        %v472 = vpop.f32.mrb[0].mxu0
        %v473 = vadd.f32 0.0, %v472
        %v474 = vpop.f32.mrb[0].mxu0
        %v475 = vadd.f32 0.0, %v474
        %v476 = vpop.f32.mrb[0].mxu0
        %v477 = vadd.f32 0.0, %v476
        %v478 = vpop.f32.mrb[0].mxu0
        %v479 = vadd.f32 0.0, %v478
        %480 = vmatprep.mubr.bf16.mxu0 0
        %481 = vmatmul.mubr.bf16.gmra.mrb[0].mxu0 %v356
        %v482 = vpop.f32.mrb[0].mxu0
        %v483 = vadd.f32 0.0, %v482
        %v484 = vpop.f32.mrb[0].mxu0
        %v485 = vadd.f32 0.0, %v484
        %v486 = vpop.f32.mrb[0].mxu0
        %v487 = vadd.f32 0.0, %v486
        %v488 = vpop.f32.mrb[0].mxu0
        %v489 = vadd.f32 0.0, %v488
        %490 = vmatprep.mubr.bf16.mxu0 0
        %491 = vmatmul.mubr.bf16.gmra.mrb[0].mxu0 %v359
        %v492 = vpop.f32.mrb[0].mxu0
        %v493 = vadd.f32 0.0, %v492
        %v494 = vpop.f32.mrb[0].mxu0
        %v495 = vadd.f32 0.0, %v494
        %v496 = vpop.f32.mrb[0].mxu0
        %v497 = vadd.f32 0.0, %v496
        %v498 = vpop.f32.mrb[0].mxu0
        %v499 = vadd.f32 0.0, %v498
        %500 = vmatprep.mubr.bf16.mxu0 0
        %501 = vmatmul.mubr.bf16.gmra.mrb[0].mxu0 %v362
        %v502 = vpop.f32.mrb[0].mxu0
        %v503 = vadd.f32 0.0, %v502
        %v504 = vpop.f32.mrb[0].mxu0
        %v505 = vadd.f32 0.0, %v504
        %v506 = vpop.f32.mrb[0].mxu0
        %v507 = vadd.f32 0.0, %v506
        %v508 = vpop.f32.mrb[0].mxu0
        %v509 = vadd.f32 0.0, %v508
        %510 = vmatprep.mubr.bf16.mxu0 0
        %511 = vmatmul.mubr.bf16.gmra.mrb[0].mxu0 %v365
        %v512 = vpop.f32.mrb[0].mxu0
        %v513 = vadd.f32 0.0, %v512
        %v514 = vpop.f32.mrb[0].mxu0
        %v515 = vadd.f32 0.0, %v514
        %v516 = vpop.f32.mrb[0].mxu0
        %v517 = vadd.f32 0.0, %v516
        %v518 = vpop.f32.mrb[0].mxu0
        %v519 = vadd.f32 0.0, %v518
        %520 = vmatprep.mubr.bf16.mxu0 0
        %521 = vmatmul.mubr.bf16.gmra.mrb[0].mxu0 %v368
        %v522 = vpop.f32.mrb[0].mxu0
        %v523 = vadd.f32 0.0, %v522
        %v524 = vpop.f32.mrb[0].mxu0
        %v525 = vadd.f32 0.0, %v524
        %v526 = vpop.f32.mrb[0].mxu0
        %v527 = vadd.f32 0.0, %v526
        %v528 = vpop.f32.mrb[0].mxu0
        %v529 = vadd.f32 0.0, %v528
        %530 = vmatprep.mubr.bf16.mxu0 0
        %531 = vmatmul.mubr.bf16.gmra.mrb[0].mxu0 %v371
        %v532 = vpop.f32.mrb[0].mxu0
        %v533 = vadd.f32 0.0, %v532
        %v534 = vpop.f32.mrb[0].mxu0
        %v535 = vadd.f32 0.0, %v534
        %v536 = vpop.f32.mrb[0].mxu0
        %v537 = vadd.f32 0.0, %v536
        %v538 = vpop.f32.mrb[0].mxu0
        %v539 = vadd.f32 0.0, %v538
        %540 = vmatprep.mubr.bf16.mxu0 0
        %541 = vmatmul.mubr.bf16.gmra.mrb[0].mxu0 %v374
        %v542 = vpop.f32.mrb[0].mxu0
        %v543 = vadd.f32 0.0, %v542
        %v544 = vpop.f32.mrb[0].mxu0
        %v545 = vadd.f32 0.0, %v544
        %v546 = vpop.f32.mrb[0].mxu0
        %v547 = vadd.f32 0.0, %v546
        %v548 = vpop.f32.mrb[0].mxu0
        %v549 = vadd.f32 0.0, %v548
        %550 = vmatprep.mubr.bf16.mxu0 0
        %551 = vmatmul.mubr.bf16.gmra.mrb[0].mxu0 %v377
        %v552 = vpop.f32.mrb[0].mxu0
        %v553 = vadd.f32 0.0, %v552
        %v554 = vpop.f32.mrb[0].mxu0
        %v555 = vadd.f32 0.0, %v554
        %v556 = vpop.f32.mrb[0].mxu0
        %v557 = vadd.f32 0.0, %v556
        %v558 = vpop.f32.mrb[0].mxu0
        %v559 = vadd.f32 0.0, %v558
        %560 = vmatprep.mubr.bf16.mxu0 0
        %561 = vmatmul.mubr.bf16.gmra.mrb[0].mxu0 %v380
        %v562 = vpop.f32.mrb[0].mxu0
        %v563 = vadd.f32 0.0, %v562
        %v564 = vpop.f32.mrb[0].mxu0
        %v565 = vadd.f32 0.0, %v564
        %v566 = vpop.f32.mrb[0].mxu0
        %v567 = vadd.f32 0.0, %v566
        %v568 = vpop.f32.mrb[0].mxu0
        %v569 = vadd.f32 0.0, %v568
        %570 = vmatprep.mubr.bf16.mxu0 0
        %571 = vmatmul.mubr.bf16.gmra.mrb[0].mxu0 %v383
        %v572 = vpop.f32.mrb[0].mxu0
        %v573 = vadd.f32 0.0, %v572
        %v574 = vpop.f32.mrb[0].mxu0
        %v575 = vadd.f32 0.0, %v574
        %v576 = vpop.f32.mrb[0].mxu0
        %v577 = vadd.f32 0.0, %v576
        %v578 = vpop.f32.mrb[0].mxu0
        %v579 = vadd.f32 0.0, %v578
        %580 = vmatprep.mubr.bf16.mxu0 0
        %581 = vmatmul.mubr.bf16.gmra.mrb[0].mxu0 %v386
        %v582 = vpop.f32.mrb[0].mxu0
        %v583 = vadd.f32 0.0, %v582
        %v584 = vpop.f32.mrb[0].mxu0
        %v585 = vadd.f32 0.0, %v584
        %v586 = vpop.f32.mrb[0].mxu0
        %v587 = vadd.f32 0.0, %v586
        %v588 = vpop.f32.mrb[0].mxu0
        %v589 = vadd.f32 0.0, %v588
        %590 = vdwg.mxu0
        %v591 = vpack.c.bf16 %v437, %v433
        %v592 = vpack.c.bf16 %v439, %v435
        %v593 = vpack.c.bf16 %v447, %v443
        %v594 = vpack.c.bf16 %v449, %v445
        %v595 = vpack.c.bf16 %v457, %v453
        %v596 = vpack.c.bf16 %v459, %v455
        %v597 = vpack.c.bf16 %v467, %v463
        %v598 = vpack.c.bf16 %v469, %v465
        %v599 = vpack.c.bf16 %v477, %v473
        %v600 = vpack.c.bf16 %v479, %v475
        %v601 = vpack.c.bf16 %v487, %v483
        %v602 = vpack.c.bf16 %v489, %v485
        %v603 = vpack.c.bf16 %v497, %v493
        %v604 = vpack.c.bf16 %v499, %v495
        %v605 = vpack.c.bf16 %v507, %v503
        %v606 = vpack.c.bf16 %v509, %v505
        %v607 = vpack.c.bf16 %v517, %v513
        %v608 = vpack.c.bf16 %v519, %v515
        %v609 = vpack.c.bf16 %v527, %v523
        %v610 = vpack.c.bf16 %v529, %v525
        %v611 = vpack.c.bf16 %v537, %v533
        %v612 = vpack.c.bf16 %v539, %v535
        %v613 = vpack.c.bf16 %v547, %v543
        %v614 = vpack.c.bf16 %v549, %v545
        %v615 = vpack.c.bf16 %v557, %v553
        %v616 = vpack.c.bf16 %v559, %v555
        %v617 = vpack.c.bf16 %v567, %v563
        %v618 = vpack.c.bf16 %v569, %v565
        %v619 = vpack.c.bf16 %v577, %v573
        %v620 = vpack.c.bf16 %v579, %v575
        %v621 = vpack.c.bf16 %v587, %v583
        %v622 = vpack.c.bf16 %v589, %v585
        %v655 = vunpack.c.l.b16 %v591
        %v656 = vunpack.c.l.b16 %v592
        %v657 = vunpack.c.h.b16 %v591
        %v658 = vunpack.c.h.b16 %v592
        %v659 = vunpack.c.l.b16 %v593
        %v660 = vunpack.c.l.b16 %v594
        %v661 = vunpack.c.h.b16 %v593
        %v662 = vunpack.c.h.b16 %v594
        %v663 = vunpack.c.l.b16 %v595
        %v664 = vunpack.c.l.b16 %v596
        %v665 = vunpack.c.h.b16 %v595
        %v666 = vunpack.c.h.b16 %v596
        %v667 = vunpack.c.l.b16 %v597
        %v668 = vunpack.c.l.b16 %v598
        %v669 = vunpack.c.h.b16 %v597
        %v670 = vunpack.c.h.b16 %v598
        %v671 = vunpack.c.l.b16 %v599
        %v672 = vunpack.c.l.b16 %v600
        %v673 = vunpack.c.h.b16 %v599
        %v674 = vunpack.c.h.b16 %v600
        %v675 = vunpack.c.l.b16 %v601
        %v676 = vunpack.c.l.b16 %v602
        %v677 = vunpack.c.h.b16 %v601
        %v678 = vunpack.c.h.b16 %v602
        %v679 = vunpack.c.l.b16 %v603
        %v680 = vunpack.c.l.b16 %v604
        %v681 = vunpack.c.h.b16 %v603
        %v682 = vunpack.c.h.b16 %v604
        %v683 = vunpack.c.l.b16 %v605
        %v684 = vunpack.c.l.b16 %v606
        %v685 = vunpack.c.h.b16 %v605
        %v686 = vunpack.c.h.b16 %v606
        %v687 = vunpack.c.l.b16 %v607
        %v688 = vunpack.c.l.b16 %v608
        %v689 = vunpack.c.h.b16 %v607
        %v690 = vunpack.c.h.b16 %v608
        %v691 = vunpack.c.l.b16 %v609
        %v692 = vunpack.c.l.b16 %v610
        %v693 = vunpack.c.h.b16 %v609
        %v694 = vunpack.c.h.b16 %v610
        %v695 = vunpack.c.l.b16 %v611
        %v696 = vunpack.c.l.b16 %v612
        %v697 = vunpack.c.h.b16 %v611
        %v698 = vunpack.c.h.b16 %v612
        %v699 = vunpack.c.l.b16 %v613
        %v700 = vunpack.c.l.b16 %v614
        %v701 = vunpack.c.h.b16 %v613
        %v702 = vunpack.c.h.b16 %v614
        %v703 = vunpack.c.l.b16 %v615
        %v704 = vunpack.c.l.b16 %v616
        %v705 = vunpack.c.h.b16 %v615
        %v706 = vunpack.c.h.b16 %v616
        %v707 = vunpack.c.l.b16 %v617
        %v708 = vunpack.c.l.b16 %v618
        %v709 = vunpack.c.h.b16 %v617
        %v710 = vunpack.c.h.b16 %v618
        %v711 = vunpack.c.l.b16 %v619
        %v712 = vunpack.c.l.b16 %v620
        %v713 = vunpack.c.h.b16 %v619
        %v714 = vunpack.c.h.b16 %v620
        %v715 = vunpack.c.l.b16 %v621
        %v716 = vunpack.c.l.b16 %v622
        %v717 = vunpack.c.h.b16 %v621
        %v718 = vunpack.c.h.b16 %v622
        %v719 = vpack.c.b16 %v656, %v655
        %v720 = vpack.c.b16 %v658, %v657
        %v721 = vpack.c.b16 %v660, %v659
        %v722 = vpack.c.b16 %v662, %v661
        %v723 = vpack.c.b16 %v664, %v663
        %v724 = vpack.c.b16 %v666, %v665
        %v725 = vpack.c.b16 %v668, %v667
        %v726 = vpack.c.b16 %v670, %v669
        %v727 = vpack.c.b16 %v672, %v671
        %v728 = vpack.c.b16 %v674, %v673
        %v729 = vpack.c.b16 %v676, %v675
        %v730 = vpack.c.b16 %v678, %v677
        %v731 = vpack.c.b16 %v680, %v679
        %v732 = vpack.c.b16 %v682, %v681
        %v733 = vpack.c.b16 %v684, %v683
        %v734 = vpack.c.b16 %v686, %v685
        %v735 = vpack.c.b16 %v688, %v687
        %v736 = vpack.c.b16 %v690, %v689
        %v737 = vpack.c.b16 %v692, %v691
        %v738 = vpack.c.b16 %v694, %v693
        %v739 = vpack.c.b16 %v696, %v695
        %v740 = vpack.c.b16 %v698, %v697
        %v741 = vpack.c.b16 %v700, %v699
        %v742 = vpack.c.b16 %v702, %v701
        %v743 = vpack.c.b16 %v704, %v703
        %v744 = vpack.c.b16 %v706, %v705
        %v745 = vpack.c.b16 %v708, %v707
        %v746 = vpack.c.b16 %v710, %v709
        %v747 = vpack.c.b16 %v712, %v711
        %v748 = vpack.c.b16 %v714, %v713
        %v749 = vpack.c.b16 %v716, %v715
        %v750 = vpack.c.b16 %v718, %v717
        %783 = vst [vmem:[%s206] sm:$0xff] %v719
        %784 = vst [vmem:[%s206 + $0x8] sm:$0xff] %v720
        %785 = vst [vmem:[%s206 + $0x10] sm:$0xff] %v721
        %786 = vst [vmem:[%s206 + $0x18] sm:$0xff] %v722
        %787 = vst [vmem:[%s206 + $0x20] sm:$0xff] %v723
        %788 = vst [vmem:[%s206 + $0x28] sm:$0xff] %v724
        %789 = vst [vmem:[%s206 + $0x30] sm:$0xff] %v725
        %790 = vst [vmem:[%s206 + $0x38] sm:$0xff] %v726
        %791 = vst [vmem:[%s206 + $0x40] sm:$0xff] %v727
        %792 = vst [vmem:[%s206 + $0x48] sm:$0xff] %v728
        %793 = vst [vmem:[%s206 + $0x50] sm:$0xff] %v729
        %794 = vst [vmem:[%s206 + $0x58] sm:$0xff] %v730
        %795 = vst [vmem:[%s206 + $0x60] sm:$0xff] %v731
        %796 = vst [vmem:[%s206 + $0x68] sm:$0xff] %v732
        %797 = vst [vmem:[%s206 + $0x70] sm:$0xff] %v733
        %798 = vst [vmem:[%s206 + $0x78] sm:$0xff] %v734
        %799 = vst [vmem:[%s206 + $0x80] sm:$0xff] %v735
        %800 = vst [vmem:[%s206 + $0x88] sm:$0xff] %v736
        %801 = vst [vmem:[%s206 + $0x90] sm:$0xff] %v737
        %802 = vst [vmem:[%s206 + $0x98] sm:$0xff] %v738
        %803 = vst [vmem:[%s206 + $0xa0] sm:$0xff] %v739
        %804 = vst [vmem:[%s206 + $0xa8] sm:$0xff] %v740
        %805 = vst [vmem:[%s206 + $0xb0] sm:$0xff] %v741
        %806 = vst [vmem:[%s206 + $0xb8] sm:$0xff] %v742
        %807 = vst [vmem:[%s206 + $0xc0] sm:$0xff] %v743
        %808 = vst [vmem:[%s206 + $0xc8] sm:$0xff] %v744
        %809 = vst [vmem:[%s206 + $0xd0] sm:$0xff] %v745
        %810 = vst [vmem:[%s206 + $0xd8] sm:$0xff] %v746
        %811 = vst [vmem:[%s206 + $0xe0] sm:$0xff] %v747
        %812 = vst [vmem:[%s206 + $0xe8] sm:$0xff] %v748
        %813 = vst [vmem:[%s206 + $0xf0] sm:$0xff] %v749
        %814 = vst [vmem:[%s206 + $0xf8] sm:$0xff] %v750
        %s815 = sand.u32 %s87, 1
        %s816 = sand.u32 %s87, 1
        %s817 = smul.addr %s816, 256
        %s818 = scalar_lea.vmem [#allocation3], %s817
        // Predicated region
        $region67: #{unetr_pr_up_block_forward.1} parent=61 // pred_check
          %p819 = pneg %p97
        $region68: #{unetr_pr_up_block_forward.1} parent=61 // pred_check_branch
          %821 = sbr.rel (%p819) target = $region70
        $region69: #{unetr_pr_up_block_forward.1} parent=61 // pred_region
          %s822 = smul.u32 32, %s17
          %s823 = smul.u32 2, %s18
          %s824 = smul.addr %s822, 4
          %s825 = sadd.s32 %s823, %s824
          %s826 = smul.addr %s825, 4
          %s827 = scalar_lea.vmem %s2, %s826
          // Predicated region
          $region71: #{unetr_pr_up_block_forward.1} parent=69 // pred_check
            _
          $region72: #{unetr_pr_up_block_forward.1} parent=69 // pred_check_branch
            %829 = sbr.rel (0) target = $region74
          $region73: #{unetr_pr_up_block_forward.1} parent=69 // pred_region
            // Predicated region
            $region75: #{unetr_pr_up_block_forward.1} parent=73 // pred_check
              _
            $region76: #{unetr_pr_up_block_forward.1} parent=73 // pred_check_branch
              %831 = sbr.rel (0) target = $region78
            $region77: #{unetr_pr_up_block_forward.1} parent=73 // pred_region
              // Predicated region
              $region90: #{unetr_pr_up_block_forward.1} parent=77 // pred_check
                _
              $region91: #{unetr_pr_up_block_forward.1} parent=77 // pred_check_branch
                %908 = sbr.rel (0) target = $region93
              $region92: #{unetr_pr_up_block_forward.1} parent=77 // pred_region
                loop: start=0, step=1, limit=1
                $region94: #{unetr_pr_up_block_forward.1} parent=92 // loop_pre_header
                  _
                $region95: #{unetr_pr_up_block_forward.1} parent=92 // loop_header
                  %s910 = sphi 0, %s914
                  %p911 = scmp.ge.s32.totalorder %s910, 1
                  %s915 = sphi %s818, %s818
                  %s916 = sphi %s827, %s827
                $region96: #{unetr_pr_up_block_forward.1} parent=92 // loop_header_branch
                  %913 = sbr.rel (%p911) target = $region100
                $region97: #{unetr_pr_up_block_forward.1} parent=92 // loop_body
                  %v917 = vld [vmem:[%s915] sm:$0xff]
                  %918 = vst [vmem:[%s916] sm:$0xff] %v917
                  %v919 = vld [vmem:[%s915 + $0x8] sm:$0xff]
                  %920 = vst [vmem:[%s916 + $0x10] sm:$0xff] %v919
                  %v921 = vld [vmem:[%s915 + $0x10] sm:$0xff]
                  %922 = vst [vmem:[%s916 + $0x20] sm:$0xff] %v921
                  %v923 = vld [vmem:[%s915 + $0x18] sm:$0xff]
                  %924 = vst [vmem:[%s916 + $0x30] sm:$0xff] %v923
                  %v925 = vld [vmem:[%s915 + $0x20] sm:$0xff]
                  %926 = vst [vmem:[%s916 + $0x40] sm:$0xff] %v925
                  %v927 = vld [vmem:[%s915 + $0x28] sm:$0xff]
                  %928 = vst [vmem:[%s916 + $0x50] sm:$0xff] %v927
                  %v929 = vld [vmem:[%s915 + $0x30] sm:$0xff]
                  %930 = vst [vmem:[%s916 + $0x60] sm:$0xff] %v929
                  %v931 = vld [vmem:[%s915 + $0x38] sm:$0xff]
                  %932 = vst [vmem:[%s916 + $0x70] sm:$0xff] %v931
                  %v933 = vld [vmem:[%s915 + $0x40] sm:$0xff]
                  %934 = vst [vmem:[%s916 + $0x80] sm:$0xff] %v933
                  %v935 = vld [vmem:[%s915 + $0x48] sm:$0xff]
                  %936 = vst [vmem:[%s916 + $0x90] sm:$0xff] %v935
                  %v937 = vld [vmem:[%s915 + $0x50] sm:$0xff]
                  %938 = vst [vmem:[%s916 + $0xa0] sm:$0xff] %v937
                  %v939 = vld [vmem:[%s915 + $0x58] sm:$0xff]
                  %940 = vst [vmem:[%s916 + $0xb0] sm:$0xff] %v939
                  %v941 = vld [vmem:[%s915 + $0x60] sm:$0xff]
                  %942 = vst [vmem:[%s916 + $0xc0] sm:$0xff] %v941
                  %v943 = vld [vmem:[%s915 + $0x68] sm:$0xff]
                  %944 = vst [vmem:[%s916 + $0xd0] sm:$0xff] %v943
                  %v945 = vld [vmem:[%s915 + $0x70] sm:$0xff]
                  %946 = vst [vmem:[%s916 + $0xe0] sm:$0xff] %v945
                  %v947 = vld [vmem:[%s915 + $0x78] sm:$0xff]
                  %948 = vst [vmem:[%s916 + $0xf0] sm:$0xff] %v947
                  %v949 = vld [vmem:[%s915 + $0x80] sm:$0xff]
                  %950 = vst [vmem:[%s916 + $0x100] sm:$0xff] %v949
                  %v951 = vld [vmem:[%s915 + $0x88] sm:$0xff]
                  %952 = vst [vmem:[%s916 + $0x110] sm:$0xff] %v951
                  %v953 = vld [vmem:[%s915 + $0x90] sm:$0xff]
                  %954 = vst [vmem:[%s916 + $0x120] sm:$0xff] %v953
                  %v955 = vld [vmem:[%s915 + $0x98] sm:$0xff]
                  %956 = vst [vmem:[%s916 + $0x130] sm:$0xff] %v955
                  %v957 = vld [vmem:[%s915 + $0xa0] sm:$0xff]
                  %958 = vst [vmem:[%s916 + $0x140] sm:$0xff] %v957
                  %v959 = vld [vmem:[%s915 + $0xa8] sm:$0xff]
                  %960 = vst [vmem:[%s916 + $0x150] sm:$0xff] %v959
                  %v961 = vld [vmem:[%s915 + $0xb0] sm:$0xff]
                  %962 = vst [vmem:[%s916 + $0x160] sm:$0xff] %v961
                  %v963 = vld [vmem:[%s915 + $0xb8] sm:$0xff]
                  %964 = vst [vmem:[%s916 + $0x170] sm:$0xff] %v963
                  %v965 = vld [vmem:[%s915 + $0xc0] sm:$0xff]
                  %966 = vst [vmem:[%s916 + $0x180] sm:$0xff] %v965
                  %v967 = vld [vmem:[%s915 + $0xc8] sm:$0xff]
                  %968 = vst [vmem:[%s916 + $0x190] sm:$0xff] %v967
                  %v969 = vld [vmem:[%s915 + $0xd0] sm:$0xff]
                  %970 = vst [vmem:[%s916 + $0x1a0] sm:$0xff] %v969
                  %v971 = vld [vmem:[%s915 + $0xd8] sm:$0xff]
                  %972 = vst [vmem:[%s916 + $0x1b0] sm:$0xff] %v971
                  %v973 = vld [vmem:[%s915 + $0xe0] sm:$0xff]
                  %974 = vst [vmem:[%s916 + $0x1c0] sm:$0xff] %v973
                  %v975 = vld [vmem:[%s915 + $0xe8] sm:$0xff]
                  %976 = vst [vmem:[%s916 + $0x1d0] sm:$0xff] %v975
                  %v977 = vld [vmem:[%s915 + $0xf0] sm:$0xff]
                  %978 = vst [vmem:[%s916 + $0x1e0] sm:$0xff] %v977
                  %v979 = vld [vmem:[%s915 + $0xf8] sm:$0xff]
                  %980 = vst [vmem:[%s916 + $0x1f0] sm:$0xff] %v979
                $region98: #{unetr_pr_up_block_forward.1} parent=92 // loop_footer
                  %s914 = sadd.s32 1, %s910
                $region99: #{unetr_pr_up_block_forward.1} parent=92 // loop_footer_branch
                  %909 = sbr.rel target = $region95
                $region100: #{unetr_pr_up_block_forward.1} parent=92 // loop_exit
                  _
              $region93: #{unetr_pr_up_block_forward.1} parent=77 // pred_fallthru
                _
              // Predicated region
              $region101: #{unetr_pr_up_block_forward.1} parent=77 // pred_check
                _
              $region102: #{unetr_pr_up_block_forward.1} parent=77 // pred_check_branch
                %982 = sbr.rel target = $region104
              $region103: #{unetr_pr_up_block_forward.1} parent=77 // pred_region
                _
              $region104: #{unetr_pr_up_block_forward.1} parent=77 // pred_fallthru
                _
            $region78: #{unetr_pr_up_block_forward.1} parent=73 // pred_fallthru
              _
            // Predicated region
            $region79: #{unetr_pr_up_block_forward.1} parent=73 // pred_check
              _
            $region80: #{unetr_pr_up_block_forward.1} parent=73 // pred_check_branch
              %833 = sbr.rel target = $region82
            $region81: #{unetr_pr_up_block_forward.1} parent=73 // pred_region
              loop: start=0, step=1, limit=1
              $region83: #{unetr_pr_up_block_forward.1} parent=81 // loop_pre_header
                _
              $region84: #{unetr_pr_up_block_forward.1} parent=81 // loop_header
                %s836 = sphi 0, %s840
                %p837 = scmp.ge.s32.totalorder %s836, 1
                %s841 = sphi %s818, %s818
                %s842 = sphi %s827, %s827
              $region85: #{unetr_pr_up_block_forward.1} parent=81 // loop_header_branch
                %839 = sbr.rel (%p837) target = $region89
              $region86: #{unetr_pr_up_block_forward.1} parent=81 // loop_body
                %v843 = vld [vmem:[%s841] sm:$0xff]
                %844 = vst [vmem:[%s842] sm:$0xff] %v843
                %v845 = vld [vmem:[%s841 + $0x8] sm:$0xff]
                %846 = vst [vmem:[%s842 + $0x10] sm:$0xff] %v845
                %v847 = vld [vmem:[%s841 + $0x10] sm:$0xff]
                %848 = vst [vmem:[%s842 + $0x20] sm:$0xff] %v847
                %v849 = vld [vmem:[%s841 + $0x18] sm:$0xff]
                %850 = vst [vmem:[%s842 + $0x30] sm:$0xff] %v849
                %v851 = vld [vmem:[%s841 + $0x20] sm:$0xff]
                %852 = vst [vmem:[%s842 + $0x40] sm:$0xff] %v851
                %v853 = vld [vmem:[%s841 + $0x28] sm:$0xff]
                %854 = vst [vmem:[%s842 + $0x50] sm:$0xff] %v853
                %v855 = vld [vmem:[%s841 + $0x30] sm:$0xff]
                %856 = vst [vmem:[%s842 + $0x60] sm:$0xff] %v855
                %v857 = vld [vmem:[%s841 + $0x38] sm:$0xff]
                %858 = vst [vmem:[%s842 + $0x70] sm:$0xff] %v857
                %v859 = vld [vmem:[%s841 + $0x40] sm:$0xff]
                %860 = vst [vmem:[%s842 + $0x80] sm:$0xff] %v859
                %v861 = vld [vmem:[%s841 + $0x48] sm:$0xff]
                %862 = vst [vmem:[%s842 + $0x90] sm:$0xff] %v861
                %v863 = vld [vmem:[%s841 + $0x50] sm:$0xff]
                %864 = vst [vmem:[%s842 + $0xa0] sm:$0xff] %v863
                %v865 = vld [vmem:[%s841 + $0x58] sm:$0xff]
                %866 = vst [vmem:[%s842 + $0xb0] sm:$0xff] %v865
                %v867 = vld [vmem:[%s841 + $0x60] sm:$0xff]
                %868 = vst [vmem:[%s842 + $0xc0] sm:$0xff] %v867
                %v869 = vld [vmem:[%s841 + $0x68] sm:$0xff]
                %870 = vst [vmem:[%s842 + $0xd0] sm:$0xff] %v869
                %v871 = vld [vmem:[%s841 + $0x70] sm:$0xff]
                %872 = vst [vmem:[%s842 + $0xe0] sm:$0xff] %v871
                %v873 = vld [vmem:[%s841 + $0x78] sm:$0xff]
                %874 = vst [vmem:[%s842 + $0xf0] sm:$0xff] %v873
                %v875 = vld [vmem:[%s841 + $0x80] sm:$0xff]
                %876 = vst [vmem:[%s842 + $0x100] sm:$0xff] %v875
                %v877 = vld [vmem:[%s841 + $0x88] sm:$0xff]
                %878 = vst [vmem:[%s842 + $0x110] sm:$0xff] %v877
                %v879 = vld [vmem:[%s841 + $0x90] sm:$0xff]
                %880 = vst [vmem:[%s842 + $0x120] sm:$0xff] %v879
                %v881 = vld [vmem:[%s841 + $0x98] sm:$0xff]
                %882 = vst [vmem:[%s842 + $0x130] sm:$0xff] %v881
                %v883 = vld [vmem:[%s841 + $0xa0] sm:$0xff]
                %884 = vst [vmem:[%s842 + $0x140] sm:$0xff] %v883
                %v885 = vld [vmem:[%s841 + $0xa8] sm:$0xff]
                %886 = vst [vmem:[%s842 + $0x150] sm:$0xff] %v885
                %v887 = vld [vmem:[%s841 + $0xb0] sm:$0xff]
                %888 = vst [vmem:[%s842 + $0x160] sm:$0xff] %v887
                %v889 = vld [vmem:[%s841 + $0xb8] sm:$0xff]
                %890 = vst [vmem:[%s842 + $0x170] sm:$0xff] %v889
                %v891 = vld [vmem:[%s841 + $0xc0] sm:$0xff]
                %892 = vst [vmem:[%s842 + $0x180] sm:$0xff] %v891
                %v893 = vld [vmem:[%s841 + $0xc8] sm:$0xff]
                %894 = vst [vmem:[%s842 + $0x190] sm:$0xff] %v893
                %v895 = vld [vmem:[%s841 + $0xd0] sm:$0xff]
                %896 = vst [vmem:[%s842 + $0x1a0] sm:$0xff] %v895
                %v897 = vld [vmem:[%s841 + $0xd8] sm:$0xff]
                %898 = vst [vmem:[%s842 + $0x1b0] sm:$0xff] %v897
                %v899 = vld [vmem:[%s841 + $0xe0] sm:$0xff]
                %900 = vst [vmem:[%s842 + $0x1c0] sm:$0xff] %v899
                %v901 = vld [vmem:[%s841 + $0xe8] sm:$0xff]
                %902 = vst [vmem:[%s842 + $0x1d0] sm:$0xff] %v901
                %v903 = vld [vmem:[%s841 + $0xf0] sm:$0xff]
                %904 = vst [vmem:[%s842 + $0x1e0] sm:$0xff] %v903
                %v905 = vld [vmem:[%s841 + $0xf8] sm:$0xff]
                %906 = vst [vmem:[%s842 + $0x1f0] sm:$0xff] %v905
              $region87: #{unetr_pr_up_block_forward.1} parent=81 // loop_footer
                %s840 = sadd.s32 1, %s836
              $region88: #{unetr_pr_up_block_forward.1} parent=81 // loop_footer_branch
                %835 = sbr.rel target = $region84
              $region89: #{unetr_pr_up_block_forward.1} parent=81 // loop_exit
                _
            $region82: #{unetr_pr_up_block_forward.1} parent=73 // pred_fallthru
              _
          $region74: #{unetr_pr_up_block_forward.1} parent=69 // pred_fallthru
            _
          %983 = vnop
        $region70: #{unetr_pr_up_block_forward.1} parent=61 // pred_fallthru
          _
      $region62: #{unetr_pr_up_block_forward.1} parent=5 // pred_fallthru
        _
      %p984 = scmp.le.s32.totalorder 2, %s8
      // Predicated region
      $region105: #{unetr_pr_up_block_forward.1} parent=5 // pred_check
        %p985 = pneg %p984
      $region106: #{unetr_pr_up_block_forward.1} parent=5 // pred_check_branch
        %987 = sbr.rel (%p985) target = $region108
      $region107: #{unetr_pr_up_block_forward.1} parent=5 // pred_region
        %s988 = ssub.s32 %s8, 2
        // Predicated region
        $region109: #{unetr_pr_up_block_forward.1} parent=107 // pred_check
          %p989 = pneg %p103
        $region110: #{unetr_pr_up_block_forward.1} parent=107 // pred_check_branch
          %991 = sbr.rel (%p989) target = $region112
        $region111: #{unetr_pr_up_block_forward.1} parent=107 // pred_region
          %s992 = sand.u32 %s88, 1
          %s993 = sand.u32 %s88, 1
          %s994 = smul.addr %s993, 256
          %s995 = scalar_lea.vmem [#allocation3], %s994
        $region112: #{unetr_pr_up_block_forward.1} parent=107 // pred_fallthru
          _
      $region108: #{unetr_pr_up_block_forward.1} parent=5 // pred_fallthru
        _
    $region6: #{unetr_pr_up_block_forward.1} parent=1 // loop_footer
      %s12 = sadd.s32 1, %s8
    $region7: #{unetr_pr_up_block_forward.1} parent=1 // loop_footer_branch
      %7 = sbr.rel target = $region3
    $region8: #{unetr_pr_up_block_forward.1} parent=1 // loop_exit
      _

</llo_original>
